<compile_context>
chip_gen: v7x
topology: tpu7x:2x2x1
jax: 0.10.0
libtpu: 0.0.40
codegen_flags: <defaults>
</compile_context>

<pallas_src>
import functools
import inspect

import jax
import jax.numpy as jnp
from jax import lax
from jax.experimental import pallas as pl
from jax.experimental.pallas import tpu as pltpu


def geglu_kernel(x_ref, wv_ref, wg_ref, bv_ref, bg_ref, o_ref, *, approximate):
    # x_ref  : (tm, dim_in)   input row tile (native dtype -> MXU)
    # wv_ref : (dim_in, tn)   value-half weight slab
    # wg_ref : (dim_in, tn)   gate-half weight slab
    # bv_ref : (1, tn)  f32   value-half bias
    # bg_ref : (1, tn)  f32   gate-half bias
    # o_ref  : (tm, tn)
    x = x_ref[...]

    # Two MXU matmuls with f32 accumulation; intermediates stay (tm, tn).
    val = jnp.dot(x, wv_ref[...], preferred_element_type=jnp.float32) + bv_ref[...]
    gate = jnp.dot(x, wg_ref[...], preferred_element_type=jnp.float32) + bg_ref[...]

    if approximate:
        # tanh-approx GELU: transcendental goes to the (otherwise idle) EUP slot.
        c = jnp.float32(0.7978845608028654)  # sqrt(2/pi)
        inner = c * (gate + jnp.float32(0.044715) * gate * gate * gate)
        gelu_gate = 0.5 * gate * (1.0 + jnp.tanh(inner))
    else:
        # Exact (erf) GELU: matches torch.nn.functional.gelu default.
        gelu_gate = 0.5 * gate * (1.0 + lax.erf(gate * jnp.float32(0.7071067811865476)))

    o_ref[...] = (val * gelu_gate).astype(o_ref.dtype)


def _round_up(a, b):
    return (a + b - 1) // b * b


def _vmem_capacity_bytes():
    try:
        return int(pltpu.get_tpu_info().vmem_capacity_bytes)
    except Exception:
        return 64 * 1024 * 1024  # conservative default (v7x per-core VMEM)


def _supports_pipeline_mode():
    try:
        return ("pipeline_mode" in inspect.signature(pl.BlockSpec).parameters
                and hasattr(pl, "Buffered"))
    except Exception:
        return False


def geglu(x, w, b, *, tm=None, tn=None, approximate=False):
    """GEGLU forward.

    x: [..., dim_in]
    w: [dim_in, 2*dim_out]   (transpose of the PyTorch Linear weight)
    b: [2*dim_out]
    returns [..., dim_out]
    """
    dim_in = x.shape[-1]
    two_dim_out = w.shape[-1]
    dim_out = two_dim_out // 2

    lead_shape = x.shape[:-1]
    x2d = x.reshape(-1, dim_in)
    M = x2d.shape[0]

    x_it = jnp.dtype(x.dtype).itemsize
    w_it = jnp.dtype(w.dtype).itemsize
    sub = 8 if x_it >= 4 else 16  # sublane multiple for the row tile

    vmem_cap = _vmem_capacity_bytes()

    # ---- row (M) tiling --------------------------------------------------
    if tm is None:
        # Bigger tiles on 128 MiB parts (v5e/v6e); 256 on 64 MiB v7x.
        tm = 512 if vmem_cap >= (100 << 20) else 256
    # Pad M only to the sublane multiple; the ragged last M block is handled
    # by the grid (cdiv), not by materializing a tile-padded copy of x in HBM.
    Mp = _round_up(M, sub)
    if Mp != M:
        x2d = jnp.pad(x2d, ((0, Mp - M), (0, 0)))
    tm = max(sub, min(_round_up(tm, sub), Mp))
    # Keep >= 2 M-steps whenever possible so both v7x TensorCores get work.
    if Mp > sub:
        tm = min(tm, _round_up(pl.cdiv(Mp, 2), sub))
    gm = pl.cdiv(Mp, tm)

    # ---- column (N) tiling over dim_out -----------------------------------
    if dim_out % 128 == 0:
        if tn is None or tn <= 0 or tn % 128 != 0 or dim_out % tn != 0:
            if dim_out <= 512:
                tn = dim_out
            else:
                tn = 128
                for cand in (512, 384, 256):
                    if dim_out % cand == 0:
                        tn = cand
                        break
        gn = dim_out // tn
        # Pass the fused weight/bias twice with offset index_maps: the gate
        # half lives `gn` column blocks right of the value half.  No HBM copy.
        wv_arr, wg_arr = w, w
        b2d = b.reshape(1, two_dim_out).astype(jnp.float32)
        bv_arr, bg_arr = b2d, b2d
        gate_off = gn
    else:
        # Fallback for non-lane-aligned dim_out: split halves in the wrapper
        # (one-time copy) so the full-extent blocks stay layout-legal.
        tn = dim_out
        gn = 1
        wv_arr, wg_arr = w[:, :dim_out], w[:, dim_out:]
        bf = b.astype(jnp.float32)
        bv_arr = bf[:dim_out].reshape(1, dim_out)
        bg_arr = bf[dim_out:].reshape(1, dim_out)
        gate_off = 0

    # Weight / bias slabs are grid-constant when gn == 1: single-buffer them to
    # halve their VMEM footprint (they are only DMA'd once anyway).
    use_single_buf = (gn == 1) and _supports_pipeline_mode()

    def _w_spec(shape, index_map):
        if use_single_buf:
            return pl.BlockSpec(shape, index_map, pipeline_mode=pl.Buffered(1))
        return pl.BlockSpec(shape, index_map)

    if gn == 1:
        grid = (gm,)
        dim_sem = ("parallel",)
        x_spec = pl.BlockSpec((tm, dim_in), lambda i: (i, 0))
        wv_spec = _w_spec((dim_in, tn), lambda i: (0, 0))
        wg_spec = _w_spec((dim_in, tn), lambda i: (0, gate_off))
        bv_spec = _w_spec((1, tn), lambda i: (0, 0))
        bg_spec = _w_spec((1, tn), lambda i: (0, gate_off))
        out_spec = pl.BlockSpec((tm, tn), lambda i: (i, 0))
    else:
        # N (weight slabs) outer, M (rows) inner: weight slabs stay resident
        # across the inner M sweep (fetched once per outer step).
        grid = (gn, gm)
        dim_sem = ("parallel", "parallel")
        x_spec = pl.BlockSpec((tm, dim_in), lambda j, i: (i, 0))
        wv_spec = _w_spec((dim_in, tn), lambda j, i: (0, j))
        wg_spec = _w_spec((dim_in, tn), lambda j, i: (0, j + gate_off))
        bv_spec = _w_spec((1, tn), lambda j, i: (0, j))
        bg_spec = _w_spec((1, tn), lambda j, i: (0, j + gate_off))
        out_spec = pl.BlockSpec((tm, tn), lambda j, i: (i, j))

    # ---- VMEM budget / compiler params -------------------------------------
    w_bufs = 1 if use_single_buf else 2
    vmem_need = (
        2 * tm * dim_in * x_it                 # double-buffered x tiles
        + 2 * w_bufs * dim_in * tn * w_it      # value + gate weight slabs
        + 2 * w_bufs * tn * 4                  # value + gate bias (f32)
        + 2 * tm * tn * x_it                   # double-buffered out tiles
        + 3 * tm * tn * 4                      # f32 val / gate / gelu temps
    )
    vmem_limit = int(min(max(int(vmem_need * 1.25), 32 * 1024 * 1024),
                         int(vmem_cap * 0.85)))

    cost = pl.CostEstimate(
        flops=2 * Mp * dim_in * two_dim_out,
        transcendentals=Mp * dim_out,
        bytes_accessed=int(Mp * dim_in * x_it
                           + dim_in * two_dim_out * w_it
                           + two_dim_out * 4
                           + Mp * dim_out * x_it),
    )

    kernel = functools.partial(geglu_kernel, approximate=approximate)

    out2d = pl.pallas_call(
        kernel,
        out_shape=jax.ShapeDtypeStruct((Mp, dim_out), x.dtype),
        grid_spec=pltpu.PrefetchScalarGridSpec(
            num_scalar_prefetch=0,
            grid=grid,
            in_specs=[x_spec, wv_spec, wg_spec, bv_spec, bg_spec],
            out_specs=out_spec,
        ),
        compiler_params=pltpu.CompilerParams(
            dimension_semantics=dim_sem,
            vmem_limit_bytes=vmem_limit),
        cost_estimate=cost,
    )(x2d, wv_arr, wg_arr, bv_arr, bg_arr)

    if Mp != M:
        out2d = out2d[:M]
    return out2d.reshape(*lead_shape, dim_out)


def geglu_reference(x, w, b):
    """Plain-JAX reference matching the PyTorch module."""
    proj = jnp.dot(x, w) + b
    dim_out = w.shape[-1] // 2
    val, gate = proj[..., :dim_out], proj[..., dim_out:]
    return val * jax.nn.gelu(gate, approximate=False)


if __name__ == "__main__":
    # Small shapes consistent with GEGLU usage inside attention blocks.
    batch, seq, dim_in, dim_out = 2, 8, 64, 128

    key = jax.random.PRNGKey(0)
    kx, kw, kb, kx2, kw2, kb2 = jax.random.split(key, 6)

    x = jax.random.normal(kx, (batch, seq, dim_in), dtype=jnp.float32)

    # Deterministic init mimicking nn.Linear(dim_in, dim_out*2):
    # uniform(-1/sqrt(dim_in), 1/sqrt(dim_in)) for weight and bias.
    bound = 1.0 / (dim_in ** 0.5)
    w = jax.random.uniform(kw, (dim_in, 2 * dim_out), dtype=jnp.float32,
                           minval=-bound, maxval=bound)
    b = jax.random.uniform(kb, (2 * dim_out,), dtype=jnp.float32,
                           minval=-bound, maxval=bound)

    out = jax.block_until_ready(geglu(x, w, b))
    ref = geglu_reference(x, w, b)
    assert out.shape == (batch, seq, dim_out)
    assert jnp.allclose(out, ref, atol=1e-5, rtol=1e-5), "mismatch vs reference"

    # Ragged batch*seq: exercises sublane-only padding + the >=2 M-step grid.
    x_ragged = jax.random.normal(kx2, (3, 5, dim_in), dtype=jnp.float32)
    out_r = jax.block_until_ready(geglu(x_ragged, w, b))
    ref_r = geglu_reference(x_ragged, w, b)
    assert out_r.shape == (3, 5, dim_out)
    assert jnp.allclose(out_r, ref_r, atol=1e-5, rtol=1e-5), "ragged mismatch"

    # N-tiled path (gn > 1): dim_out=256 split into two tn=128 slabs.
    dim_out2 = 256
    w2 = jax.random.uniform(kw2, (dim_in, 2 * dim_out2), dtype=jnp.float32,
                            minval=-bound, maxval=bound)
    b2 = jax.random.uniform(kb2, (2 * dim_out2,), dtype=jnp.float32,
                            minval=-bound, maxval=bound)
    out_n = jax.block_until_ready(geglu(x, w2, b2, tn=128))
    ref_n = geglu_reference(x, w2, b2)
    assert out_n.shape == (batch, seq, dim_out2)
    assert jnp.allclose(out_n, ref_n, atol=1e-5, rtol=1e-5), "n-tiled mismatch"

    print("KERNEL_OK")
</pallas_src>

<mosaic_0001>
module attributes {stable_mosaic.version = 11 : i64} {
  func.func @geglu_kernel(%arg0: i32, %arg1: memref<8x64xf32, #tpu.memory_space<vmem>>, %arg2: memref<64x128xf32, #tpu.memory_space<vmem>>, %arg3: memref<64x128xf32, #tpu.memory_space<vmem>>, %arg4: memref<1x128xf32, #tpu.memory_space<vmem>>, %arg5: memref<1x128xf32, #tpu.memory_space<vmem>>, %arg6: memref<8x128xf32, #tpu.memory_space<vmem>>) attributes {dimension_semantics = [#tpu.dimension_semantics<parallel>], iteration_bounds = array<i64: 2>, scalar_prefetch = 0 : i64, scratch_operands = 0 : i64, tpu.core_type = #tpu.core_type<tc>, window_params = [{transform_indices = @transform_0, window_bounds = array<i64: 8, 64>}, {pipeline_mode = #tpu.pipeline_mode<synchronous>, transform_indices = @transform_1, window_bounds = array<i64: 64, 128>}, {pipeline_mode = #tpu.pipeline_mode<synchronous>, transform_indices = @transform_2, window_bounds = array<i64: 64, 128>}, {pipeline_mode = #tpu.pipeline_mode<synchronous>, transform_indices = @transform_3, window_bounds = array<i64: 1, 128>}, {pipeline_mode = #tpu.pipeline_mode<synchronous>, transform_indices = @transform_4, window_bounds = array<i64: 1, 128>}, {transform_indices = @transform_5, window_bounds = array<i64: 8, 128>}]} {
    %c0 = arith.constant 0 : index
    %c0_0 = arith.constant 0 : index
    %0 = vector.load %arg1[%c0, %c0_0] : memref<8x64xf32, #tpu.memory_space<vmem>>, vector<8x64xf32>
    %c0_1 = arith.constant 0 : index
    %c0_2 = arith.constant 0 : index
    %1 = vector.load %arg2[%c0_1, %c0_2] : memref<64x128xf32, #tpu.memory_space<vmem>>, vector<64x128xf32>
    %cst = arith.constant dense<0.000000e+00> : vector<8x128xf32>
    %2 = tpu.matmul %0, %1, %cst {dimension_numbers = #tpu.dot_dimension_numbers<[1], [0], [0], [1], [0, 0, 1, 1], [], []>} : vector<8x64xf32>, vector<64x128xf32>, vector<8x128xf32> -> vector<8x128xf32>
    %c0_3 = arith.constant 0 : index
    %c0_4 = arith.constant 0 : index
    %3 = vector.load %arg4[%c0_3, %c0_4] : memref<1x128xf32, #tpu.memory_space<vmem>>, vector<1x128xf32>
    %4 = vector.broadcast %3 : vector<1x128xf32> to vector<8x128xf32>
    %5 = arith.addf %2, %4 : vector<8x128xf32>
    %c0_5 = arith.constant 0 : index
    %c0_6 = arith.constant 0 : index
    %6 = vector.load %arg3[%c0_5, %c0_6] : memref<64x128xf32, #tpu.memory_space<vmem>>, vector<64x128xf32>
    %cst_7 = arith.constant dense<0.000000e+00> : vector<8x128xf32>
    %7 = tpu.matmul %0, %6, %cst_7 {dimension_numbers = #tpu.dot_dimension_numbers<[1], [0], [0], [1], [0, 0, 1, 1], [], []>} : vector<8x64xf32>, vector<64x128xf32>, vector<8x128xf32> -> vector<8x128xf32>
    %c0_8 = arith.constant 0 : index
    %c0_9 = arith.constant 0 : index
    %8 = vector.load %arg5[%c0_8, %c0_9] : memref<1x128xf32, #tpu.memory_space<vmem>>, vector<1x128xf32>
    %9 = vector.broadcast %8 : vector<1x128xf32> to vector<8x128xf32>
    %10 = arith.addf %7, %9 : vector<8x128xf32>
    %cst_10 = arith.constant 5.000000e-01 : f32
    %11 = vector.broadcast %cst_10 : f32 to vector<8x128xf32>
    %12 = arith.mulf %11, %10 : vector<8x128xf32>
    %cst_11 = arith.constant 0.707106769 : f32
    %13 = vector.broadcast %cst_11 : f32 to vector<8x128xf32>
    %14 = arith.mulf %10, %13 : vector<8x128xf32>
    %15 = math.erf %14 : vector<8x128xf32>
    %cst_12 = arith.constant 1.000000e+00 : f32
    %16 = vector.broadcast %cst_12 : f32 to vector<8x128xf32>
    %17 = arith.addf %16, %15 : vector<8x128xf32>
    %18 = arith.mulf %12, %17 : vector<8x128xf32>
    %19 = arith.mulf %5, %18 : vector<8x128xf32>
    %c0_13 = arith.constant 0 : index
    %c0_14 = arith.constant 0 : index
    %20 = vector.load %arg6[%c0_13, %c0_14] : memref<8x128xf32, #tpu.memory_space<vmem>>, vector<8x128xf32>
    tpu.vector_store %arg6[%c0_13, %c0_14], %19 {strides = array<i32>} : memref<8x128xf32, #tpu.memory_space<vmem>>, vector<8x128xf32>,
    return
  }
  func.func @transform_0(%arg0: i32) -> (i32, i32) {
    %c0_i32 = arith.constant 0 : i32
    %c0_i32_0 = arith.constant 0 : i32
    return %arg0, %c0_i32 : i32, i32
  }
  func.func @transform_1(%arg0: i32) -> (i32, i32) {
    %c0_i32 = arith.constant 0 : i32
    %c0_i32_0 = arith.constant 0 : i32
    %c0_i32_1 = arith.constant 0 : i32
    return %c0_i32, %c0_i32_0 : i32, i32
  }
  func.func @transform_2(%arg0: i32) -> (i32, i32) {
    %c0_i32 = arith.constant 0 : i32
    %c1_i32 = arith.constant 1 : i32
    %c0_i32_0 = arith.constant 0 : i32
    return %c0_i32, %c1_i32 : i32, i32
  }
  func.func @transform_3(%arg0: i32) -> (i32, i32) {
    %c0_i32 = arith.constant 0 : i32
    %c0_i32_0 = arith.constant 0 : i32
    %c0_i32_1 = arith.constant 0 : i32
    return %c0_i32, %c0_i32_0 : i32, i32
  }
  func.func @transform_4(%arg0: i32) -> (i32, i32) {
    %c0_i32 = arith.constant 0 : i32
    %c1_i32 = arith.constant 1 : i32
    %c0_i32_0 = arith.constant 0 : i32
    return %c0_i32, %c1_i32 : i32, i32
  }
  func.func @transform_5(%arg0: i32) -> (i32, i32) {
    %c0_i32 = arith.constant 0 : i32
    %c0_i32_0 = arith.constant 0 : i32
    return %arg0, %c0_i32 : i32, i32
  }
}

</mosaic_0001>

<llo_original>
// kernel: tpu_custom_call.1
$region0: #{tpu_custom_call.1}
  #allocation0 [shape = 'u32[]', space=smem, size = 0x4, offset = 0x4, fixed_abs, tag = 'smem constant byte address 0x4 - core index']
  #allocation1 [shape = 'u32[144,128]{1,0:T(1,128)}', space=vmem, size = 0x12000, scoped, tag = 'internal scratch']
  %s0 = inlined_call_operand.hbm [shape: f32[16,64], index: 0, kind: input, shape index: {}]
  %s1 = inlined_call_operand.hbm [shape: f32[64,256], index: 1, kind: input, shape index: {}]
  %s2 = inlined_call_operand.hbm [shape: f32[64,256], index: 2, kind: input, shape index: {}]
  %s3 = inlined_call_operand.vmem [shape: f32[1,256], index: 3, kind: input, shape index: {}]
  %s4 = inlined_call_operand.vmem [shape: f32[1,256], index: 4, kind: input, shape index: {}]
  %s5 = inlined_call_operand.hbm [shape: f32[16,128], index: 5, kind: output, shape index: {}]
  %s6 = sld [smem:[#allocation0]]
  $region65: #{tpu_custom_call.1} parent=0
    _
  %s8 = ssub.s32 1, %s6
  %s9 = scalar_select 0, %s8, %s6
  $region1: #{tpu_custom_call.1} parent=0
    #allocation2 [shape = 'u8[8192]{0}', space=vmem, size = 0x2000, scoped, tag = 'input window, operand 0']
    #allocation3 [shape = 's32[2]{0}', space=sflag, size = 0x8, scoped, tag = 'scoped memory for tpu_custom_call.1']
    #allocation4 [shape = 's32[2]{0}', space=sflag, size = 0x8, scoped, tag = 'scoped memory for tpu_custom_call.1']
    #allocation5 [shape = 'u8[32768]{0}', space=vmem, size = 0x8000, scoped, tag = 'input window, operand 1, single buffered']
    #allocation6 [shape = 's32[1]{0}', space=sflag, size = 0x4, scoped, tag = 'scoped memory for tpu_custom_call.1']
    #allocation7 [shape = 'u8[32768]{0}', space=vmem, size = 0x8000, scoped, tag = 'input window, operand 2, single buffered']
    #allocation8 [shape = 'u8[8192]{0}', space=vmem, size = 0x2000, scoped, tag = 'output window, operand 0']
    %10 = vsyncpa [#allocation3], 0
    %s11 = scalar_lea.sflag [#allocation3], 1
    %12 = vsyncpa %s11, 0
    %13 = vsyncpa [#allocation6], 0
    %14 = vsyncpa [#allocation4], 0
    %s15 = scalar_lea.sflag [#allocation4], 1
    %16 = vsyncpa %s15, 0
    loop: start=0, step=1, limit=4
    $region2: #{tpu_custom_call.1} parent=1 // loop_pre_header
      _
    $region3: #{tpu_custom_call.1} parent=1 // loop_header
      %s18 = sphi 0, %s22
      %p19 = scmp.ge.s32.totalorder %s18, 4
      %s28 = sphi 0, %s30
      %s31 = sphi 0, %s28
      %s32 = sphi 0, %s31
      %s48 = sphi 0, %s32
      %s52 = sphi 0, %s52
      %s54 = sphi 0, %s52
      %s55 = sphi 0, %s54
      %s69 = sphi 0, %s55
      %s73 = sphi 0, %s73
      %s75 = sphi 0, %s73
      %s76 = sphi 0, %s75
      %s90 = sphi 0, %s76
      %s94 = sphi 0, %s94
      %s96 = sphi 0, %s94
      %s97 = sphi 0, %s96
      %s111 = sphi 0, %s97
      %s115 = sphi 0, %s115
      %s117 = sphi 0, %s115
      %s118 = sphi 0, %s117
      %s132 = sphi 0, %s118
      %s138 = sphi 0, %s140
      %s141 = sphi 0, %s138
      %s142 = sphi 0, %s141
      %s158 = sphi 0, %s142
    $region4: #{tpu_custom_call.1} parent=1 // loop_header_branch
      %21 = sbr.rel (%p19) target = $region8
    $region5: #{tpu_custom_call.1} parent=1 // loop_body
      %s23 = ssub.s32 %s18, 1
      %s24 = ssub.s32 %s18, 2
      %s25 = sadd.s32 %s18, 1
      %s26 = ssub.s32 %s18, %s25
      %p27 = scmp.eq.s32.totalorder %s26, 0
      %s29 = sadd.s32 %s28, 1
      %s30 = scalar_select %p27, %s28, %s29
      %p33 = pneg %p27
      %p34 = scmp.eq.s32.totalorder %s18, 1
      %p35 = por %p33, %p34
      %p36 = scmp.ne.s32.totalorder %s28, %s31
      %p37 = scmp.eq.s32.totalorder %s18, 0
      %p38 = por %p36, %p37
      %p39 = scmp.ne.s32.totalorder %s28, %s31
      %p40 = scmp.eq.s32.totalorder %s23, 1
      %p41 = por %p39, %p40
      %p42 = scmp.ne.s32.totalorder %s31, %s32
      %p43 = scmp.eq.s32.totalorder %s23, 0
      %p44 = por %p42, %p43
      %p45 = scmp.ne.s32.totalorder %s31, %s32
      %p46 = scmp.eq.s32.totalorder %s24, 1
      %p47 = por %p45, %p46
      %p49 = scmp.ne.s32.totalorder %s32, %s48
      %p50 = scmp.eq.s32.totalorder %s24, 0
      %p51 = por %p49, %p50
      %s53 = sadd.s32 %s52, 1
      %p56 = scmp.eq.s32.totalorder %s18, 1
      %p57 = scmp.ne.s32.totalorder %s52, %s54
      %p58 = scmp.eq.s32.totalorder %s18, 0
      %p59 = por %p57, %p58
      %p60 = scmp.ne.s32.totalorder %s52, %s54
      %p61 = scmp.eq.s32.totalorder %s23, 1
      %p62 = por %p60, %p61
      %p63 = scmp.ne.s32.totalorder %s54, %s55
      %p64 = scmp.eq.s32.totalorder %s23, 0
      %p65 = por %p63, %p64
      %p66 = scmp.ne.s32.totalorder %s54, %s55
      %p67 = scmp.eq.s32.totalorder %s24, 1
      %p68 = por %p66, %p67
      %p70 = scmp.ne.s32.totalorder %s55, %s69
      %p71 = scmp.eq.s32.totalorder %s24, 0
      %p72 = por %p70, %p71
      %s74 = sadd.s32 %s73, 1
      %p77 = scmp.eq.s32.totalorder %s18, 1
      %p78 = scmp.ne.s32.totalorder %s73, %s75
      %p79 = scmp.eq.s32.totalorder %s18, 0
      %p80 = por %p78, %p79
      %p81 = scmp.ne.s32.totalorder %s73, %s75
      %p82 = scmp.eq.s32.totalorder %s23, 1
      %p83 = por %p81, %p82
      %p84 = scmp.ne.s32.totalorder %s75, %s76
      %p85 = scmp.eq.s32.totalorder %s23, 0
      %p86 = por %p84, %p85
      %p87 = scmp.ne.s32.totalorder %s75, %s76
      %p88 = scmp.eq.s32.totalorder %s24, 1
      %p89 = por %p87, %p88
      %p91 = scmp.ne.s32.totalorder %s76, %s90
      %p92 = scmp.eq.s32.totalorder %s24, 0
      %p93 = por %p91, %p92
      %s95 = sadd.s32 %s94, 1
      %p98 = scmp.eq.s32.totalorder %s18, 1
      %p99 = scmp.ne.s32.totalorder %s94, %s96
      %p100 = scmp.eq.s32.totalorder %s18, 0
      %p101 = por %p99, %p100
      %p102 = scmp.ne.s32.totalorder %s94, %s96
      %p103 = scmp.eq.s32.totalorder %s23, 1
      %p104 = por %p102, %p103
      %p105 = scmp.ne.s32.totalorder %s96, %s97
      %p106 = scmp.eq.s32.totalorder %s23, 0
      %p107 = por %p105, %p106
      %p108 = scmp.ne.s32.totalorder %s96, %s97
      %p109 = scmp.eq.s32.totalorder %s24, 1
      %p110 = por %p108, %p109
      %p112 = scmp.ne.s32.totalorder %s97, %s111
      %p113 = scmp.eq.s32.totalorder %s24, 0
      %p114 = por %p112, %p113
      %s116 = sadd.s32 %s115, 1
      %p119 = scmp.eq.s32.totalorder %s18, 1
      %p120 = scmp.ne.s32.totalorder %s115, %s117
      %p121 = scmp.eq.s32.totalorder %s18, 0
      %p122 = por %p120, %p121
      %p123 = scmp.ne.s32.totalorder %s115, %s117
      %p124 = scmp.eq.s32.totalorder %s23, 1
      %p125 = por %p123, %p124
      %p126 = scmp.ne.s32.totalorder %s117, %s118
      %p127 = scmp.eq.s32.totalorder %s23, 0
      %p128 = por %p126, %p127
      %p129 = scmp.ne.s32.totalorder %s117, %s118
      %p130 = scmp.eq.s32.totalorder %s24, 1
      %p131 = por %p129, %p130
      %p133 = scmp.ne.s32.totalorder %s118, %s132
      %p134 = scmp.eq.s32.totalorder %s24, 0
      %p135 = por %p133, %p134
      %s136 = ssub.s32 %s18, %s25
      %p137 = scmp.eq.s32.totalorder %s136, 0
      %s139 = sadd.s32 %s138, 1
      %s140 = scalar_select %p137, %s138, %s139
      %p143 = pneg %p137
      %p144 = scmp.eq.s32.totalorder %s18, 1
      %p145 = por %p143, %p144
      %p146 = scmp.ne.s32.totalorder %s138, %s141
      %p147 = scmp.eq.s32.totalorder %s18, 0
      %p148 = por %p146, %p147
      %p149 = scmp.ne.s32.totalorder %s138, %s141
      %p150 = scmp.eq.s32.totalorder %s23, 1
      %p151 = por %p149, %p150
      %p152 = scmp.ne.s32.totalorder %s141, %s142
      %p153 = scmp.eq.s32.totalorder %s23, 0
      %p154 = por %p152, %p153
      %p155 = scmp.ne.s32.totalorder %s141, %s142
      %p156 = scmp.eq.s32.totalorder %s24, 1
      %p157 = por %p155, %p156
      %p159 = scmp.ne.s32.totalorder %s142, %s158
      %p160 = scmp.eq.s32.totalorder %s24, 0
      %p161 = por %p159, %p160
      %p162 = scmp.le.s32.totalorder 1, %s18
      %p163 = scmp.lt.s32.totalorder %s18, 3
      %p164 = pnand %p162, %p163
      %p165 = pneg %p164
      // Predicated region
      $region9: #{tpu_custom_call.1} parent=5 // pred_check
        _
      $region10: #{tpu_custom_call.1} parent=5 // pred_check_branch
        %167 = sbr.rel (%p164) target = $region12
      $region11: #{tpu_custom_call.1} parent=5 // pred_region
        %s168 = ssub.s32 %s18, 1
        // Predicated region
        $region13: #{tpu_custom_call.1} parent=11 // pred_check
          %p169 = pneg %p65
        $region14: #{tpu_custom_call.1} parent=11 // pred_check_branch
          %171 = sbr.rel (%p169) target = $region16
        $region15: #{tpu_custom_call.1} parent=11 // pred_region
          %s173 = ssub.s32 1024, 1024
          %174 = vsyncadd [#allocation6], %s173
          %s175 = sshll.u32 [#allocation5], 4
          %s176 = int_to_ptr.vmem [resolvable:$true] %s175
          %181 = dma.hbm_to_vmem [thread:$0]  %s1, 1024, %s176, [#allocation6], 256, 128, 8
        $region16: #{tpu_custom_call.1} parent=11 // pred_fallthru
          _
        // Predicated region
        $region17: #{tpu_custom_call.1} parent=11 // pred_check
          %p182 = pneg %p86
        $region18: #{tpu_custom_call.1} parent=11 // pred_check_branch
          %184 = sbr.rel (%p182) target = $region20
        $region19: #{tpu_custom_call.1} parent=11 // pred_region
          %s186 = ssub.s32 1024, 1024
          %187 = vsyncadd [#allocation6], %s186
          %s188 = scalar_lea.hbm %s2, 128
          %s189 = sshll.u32 [#allocation7], 4
          %s190 = int_to_ptr.vmem [resolvable:$true] %s189
          %195 = dma.hbm_to_vmem [thread:$0]  %s188, 1024, %s190, [#allocation6], 256, 128, 8
        $region20: #{tpu_custom_call.1} parent=11 // pred_fallthru
          _
        // Predicated region
        $region21: #{tpu_custom_call.1} parent=11 // pred_check
          %p196 = pneg %p107
        $region22: #{tpu_custom_call.1} parent=11 // pred_check_branch
          %198 = sbr.rel (%p196) target = $region24
        $region23: #{tpu_custom_call.1} parent=11 // pred_region
          _
        $region24: #{tpu_custom_call.1} parent=11 // pred_fallthru
          _
        // Predicated region
        $region25: #{tpu_custom_call.1} parent=11 // pred_check
          %p199 = pneg %p128
        $region26: #{tpu_custom_call.1} parent=11 // pred_check_branch
          %201 = sbr.rel (%p199) target = $region28
        $region27: #{tpu_custom_call.1} parent=11 // pred_region
          %s202 = scalar_lea.vmem %s4, 1
        $region28: #{tpu_custom_call.1} parent=11 // pred_fallthru
          _
      $region12: #{tpu_custom_call.1} parent=5 // pred_fallthru
        _
      %p203 = scmp.lt.s32.totalorder %s18, 2
      // Predicated region
      $region29: #{tpu_custom_call.1} parent=5 // pred_check
        %p204 = pneg %p203
      $region30: #{tpu_custom_call.1} parent=5 // pred_check_branch
        %206 = sbr.rel (%p204) target = $region32
      $region31: #{tpu_custom_call.1} parent=5 // pred_region
        // Predicated region
        $region33: #{tpu_custom_call.1} parent=31 // pred_check
          %p207 = pneg %p38
        $region34: #{tpu_custom_call.1} parent=31 // pred_check_branch
          %209 = sbr.rel (%p207) target = $region36
        $region35: #{tpu_custom_call.1} parent=31 // pred_region
          %s210 = sand.u32 %s28, 1
          %s211 = scalar_lea.sflag [#allocation3], %s210
          %s212 = sand.u32 %s28, 1
          %s213 = smul.addr %s212, 8
          %s214 = scalar_lea.vmem [#allocation2], %s213
          %s216 = ssub.s32 128, 128
          %217 = vsyncadd %s211, %s216
          %s218 = smul.addr %s18, 128
          %s219 = scalar_lea.hbm %s0, %s218
          %s221 = sshll.u32 %s214, 4
          %s222 = int_to_ptr.vmem [resolvable:$true] %s221
          %224 = dma.hbm_to_vmem [thread:$0]  %s219, 128, %s222, %s211
        $region36: #{tpu_custom_call.1} parent=31 // pred_fallthru
          _
      $region32: #{tpu_custom_call.1} parent=5 // pred_fallthru
        _
      %p225 = scmp.le.s32.totalorder 1, %s18
      %p226 = scmp.lt.s32.totalorder %s18, 3
      %p227 = pnand %p225, %p226
      %p228 = pneg %p227
      // Predicated region
      $region37: #{tpu_custom_call.1} parent=5 // pred_check
        _
      $region38: #{tpu_custom_call.1} parent=5 // pred_check_branch
        %230 = sbr.rel (%p227) target = $region40
      $region39: #{tpu_custom_call.1} parent=5 // pred_region
        %s231 = ssub.s32 %s18, 1
        %s232 = sand.u32 %s31, 1
        %s233 = scalar_lea.sflag [#allocation3], %s232
        %s234 = sand.u32 %s31, 1
        %s235 = smul.addr %s234, 8
        %s236 = scalar_lea.vmem [#allocation2], %s235
        // Predicated region
        $region41: #{tpu_custom_call.1} parent=39 // pred_check
          %p237 = pneg %p44
        $region42: #{tpu_custom_call.1} parent=39 // pred_check_branch
          %239 = sbr.rel (%p237) target = $region44
        $region43: #{tpu_custom_call.1} parent=39 // pred_region
          %240 = dma.done %s233, 128
        $region44: #{tpu_custom_call.1} parent=39 // pred_fallthru
          _
        // Predicated region
        $region45: #{tpu_custom_call.1} parent=39 // pred_check
          %p241 = pneg %p65
        $region46: #{tpu_custom_call.1} parent=39 // pred_check_branch
          %243 = sbr.rel (%p241) target = $region48
        $region47: #{tpu_custom_call.1} parent=39 // pred_region
          %244 = dma.done [#allocation6], 1024
        $region48: #{tpu_custom_call.1} parent=39 // pred_fallthru
          _
        // Predicated region
        $region49: #{tpu_custom_call.1} parent=39 // pred_check
          %p245 = pneg %p86
        $region50: #{tpu_custom_call.1} parent=39 // pred_check_branch
          %247 = sbr.rel (%p245) target = $region52
        $region51: #{tpu_custom_call.1} parent=39 // pred_region
          %248 = dma.done [#allocation6], 1024
        $region52: #{tpu_custom_call.1} parent=39 // pred_fallthru
          _
        %s249 = sand.u32 %s31, 1
        %s250 = scalar_lea.sflag [#allocation3], %s249
        %s251 = sand.u32 %s31, 1
        %s252 = smul.addr %s251, 8
        %s253 = scalar_lea.vmem [#allocation2], %s252
        %p254 = pneg %p44
        %p255 = pneg %p41
        %p256 = pneg %p65
        %p257 = pneg %p62
        %p258 = pneg %p86
        %p259 = pneg %p83
        %p260 = pneg %p107
        %p261 = pneg %p104
        %s262 = scalar_lea.vmem %s4, 1
        %p263 = pneg %p128
        %p264 = pneg %p125
        %p265 = pneg %p154
        %p266 = pneg %p151
        %s267 = sand.u32 %s141, 1
        %s268 = scalar_lea.sflag [#allocation4], %s267
        %s269 = sand.u32 %s141, 1
        %s270 = smul.addr %s269, 8
        %s271 = scalar_lea.vmem [#allocation8], %s270
        %s272 = scalar_lea.vmem %s4, 1
        %v273 = vld [vmem:[%s236] sm:$0xff]
        %v274 = vld [vmem:[#allocation5] sm:$0xff]
        %v275 = vld [vmem:[#allocation5 + $0x8] sm:$0xff]
        %v276 = vld [vmem:[#allocation5 + $0x10] sm:$0xff]
        %v277 = vld [vmem:[#allocation5 + $0x18] sm:$0xff]
        %v278 = vld [vmem:[#allocation5 + $0x20] sm:$0xff]
        %v279 = vld [vmem:[#allocation5 + $0x28] sm:$0xff]
        %v280 = vld [vmem:[#allocation5 + $0x30] sm:$0xff]
        %v281 = vld [vmem:[#allocation5 + $0x38] sm:$0xff]
        %v282 = vld [vmem:[%s3] sm:$0x1]
        %v284 = vlaneseq
        %v285 = vshrl.u32 %v284, 7
        %v286 = vsub.s32 0, %v285
        %v287 = vrot.slane %v282, %v286
        %vm289 = vcmask 523264
        %v291 = vsel %vm289, %v273, 0
        %293 = vmatprep.subr.mxu0 0.0
        %294 = vmatpush1.msra.mxu0 %v274
        %295 = vmatprep.subr.mxu0 0.0
        %296 = vmatpush1.msra.mxu0 %v275
        %297 = vmatprep.subr.mxu0 0.0
        %298 = vmatpush1.msra.mxu0 %v276
        %299 = vmatprep.subr.mxu0 0.0
        %300 = vmatpush1.msra.mxu0 %v277
        %301 = vmatprep.subr.mxu0 0.0
        %302 = vmatpush1.msra.mxu0 %v278
        %303 = vmatprep.subr.mxu0 0.0
        %304 = vmatpush1.msra.mxu0 %v279
        %305 = vmatprep.subr.mxu0 0.0
        %306 = vmatpush1.msra.mxu0 %v280
        %307 = vmatprep.subr.mxu0 0.0
        %308 = vmatpush1.msra.mxu0 %v281
        %309 = vmatprep.subr.mxu0 0.0
        %310 = vmatpush1.msra.mxu0 0.0
        %311 = vmatprep.subr.mxu0 0.0
        %312 = vmatpush1.msra.mxu0 0.0
        %313 = vmatprep.subr.mxu0 0.0
        %314 = vmatpush1.msra.mxu0 0.0
        %315 = vmatprep.subr.mxu0 0.0
        %316 = vmatpush1.msra.mxu0 0.0
        %317 = vmatprep.subr.mxu0 0.0
        %318 = vmatpush1.msra.mxu0 0.0
        %319 = vmatprep.subr.mxu0 0.0
        %320 = vmatpush1.msra.mxu0 0.0
        %321 = vmatprep.subr.mxu0 0.0
        %322 = vmatpush1.msra.mxu0 0.0
        %323 = vmatprep.subr.mxu0 0.0
        %324 = vmatpush1.msra.mxu0 0.0
        %325 = vmatprep.subr.mxu0 0.0
        %326 = vmatpush1.msra.mxu0 0.0
        %327 = vmatprep.subr.mxu0 0.0
        %328 = vmatpush1.msra.mxu0 0.0
        %329 = vmatprep.subr.mxu0 0.0
        %330 = vmatpush1.msra.mxu0 0.0
        %331 = vmatprep.subr.mxu0 0.0
        %332 = vmatpush1.msra.mxu0 0.0
        %333 = vmatprep.subr.mxu0 0.0
        %334 = vmatpush1.msra.mxu0 0.0
        %335 = vmatprep.subr.mxu0 0.0
        %336 = vmatpush1.msra.mxu0 0.0
        %337 = vmatprep.subr.mxu0 0.0
        %338 = vmatpush1.msra.mxu0 0.0
        %339 = vmatprep.subr.mxu0 0.0
        %340 = vmatpush1.msra.mxu0 0.0
        %341 = vmatprep.subr.mxu0 0.0
        %342 = vmatpush1.msra.mxu0 0.0
        %343 = vmatprep.subr.mxu0 0.0
        %344 = vmatpush1.msra.mxu0 0.0
        %345 = vmatprep.subr.mxu0 0.0
        %346 = vmatpush1.msra.mxu0 0.0
        %347 = vmatprep.subr.mxu0 0.0
        %348 = vmatpush1.msra.mxu0 0.0
        %349 = vmatprep.subr.mxu0 0.0
        %350 = vmatpush1.msra.mxu0 0.0
        %351 = vmatprep.subr.mxu0 0.0
        %352 = vmatpush1.msra.mxu0 0.0
        %353 = vmatprep.subr.mxu0 0.0
        %354 = vmatpush1.msra.mxu0 0.0
        %355 = vmatprep.subr.mxu0 0.0
        %356 = vmatpush1.msra.mxu0 0.0
        %357 = vmatprep.mubr.f32.mxu0 0.0
        %358 = vmatmul.mubr.f32.gmra.mrb[0].mxu0 %v291
        %v359 = vpop.f32.mrb[0].mxu0
        %v360 = vadd.f32 %v287, %v359
        %v361 = vpop.f32.mrb[0].mxu0
        %362 = vdwg.mxu0
        %v363 = vld [vmem:[#allocation7] sm:$0xff]
        %v364 = vld [vmem:[#allocation7 + $0x8] sm:$0xff]
        %v365 = vld [vmem:[#allocation7 + $0x10] sm:$0xff]
        %v366 = vld [vmem:[#allocation7 + $0x18] sm:$0xff]
        %v367 = vld [vmem:[#allocation7 + $0x20] sm:$0xff]
        %v368 = vld [vmem:[#allocation7 + $0x28] sm:$0xff]
        %v369 = vld [vmem:[#allocation7 + $0x30] sm:$0xff]
        %v370 = vld [vmem:[#allocation7 + $0x38] sm:$0xff]
        %v371 = vld [vmem:[%s272] sm:$0x1]
        %v373 = vlaneseq
        %v374 = vshrl.u32 %v373, 7
        %v375 = vsub.s32 0, %v374
        %v376 = vrot.slane %v371, %v375
        %378 = vmatprep.subr.mxu0 0.0
        %379 = vmatpush1.msra.mxu0 %v363
        %380 = vmatprep.subr.mxu0 0.0
        %381 = vmatpush1.msra.mxu0 %v364
        %382 = vmatprep.subr.mxu0 0.0
        %383 = vmatpush1.msra.mxu0 %v365
        %384 = vmatprep.subr.mxu0 0.0
        %385 = vmatpush1.msra.mxu0 %v366
        %386 = vmatprep.subr.mxu0 0.0
        %387 = vmatpush1.msra.mxu0 %v367
        %388 = vmatprep.subr.mxu0 0.0
        %389 = vmatpush1.msra.mxu0 %v368
        %390 = vmatprep.subr.mxu0 0.0
        %391 = vmatpush1.msra.mxu0 %v369
        %392 = vmatprep.subr.mxu0 0.0
        %393 = vmatpush1.msra.mxu0 %v370
        %394 = vmatprep.subr.mxu0 0.0
        %395 = vmatpush1.msra.mxu0 0.0
        %396 = vmatprep.subr.mxu0 0.0
        %397 = vmatpush1.msra.mxu0 0.0
        %398 = vmatprep.subr.mxu0 0.0
        %399 = vmatpush1.msra.mxu0 0.0
        %400 = vmatprep.subr.mxu0 0.0
        %401 = vmatpush1.msra.mxu0 0.0
        %402 = vmatprep.subr.mxu0 0.0
        %403 = vmatpush1.msra.mxu0 0.0
        %404 = vmatprep.subr.mxu0 0.0
        %405 = vmatpush1.msra.mxu0 0.0
        %406 = vmatprep.subr.mxu0 0.0
        %407 = vmatpush1.msra.mxu0 0.0
        %408 = vmatprep.subr.mxu0 0.0
        %409 = vmatpush1.msra.mxu0 0.0
        %410 = vmatprep.subr.mxu0 0.0
        %411 = vmatpush1.msra.mxu0 0.0
        %412 = vmatprep.subr.mxu0 0.0
        %413 = vmatpush1.msra.mxu0 0.0
        %414 = vmatprep.subr.mxu0 0.0
        %415 = vmatpush1.msra.mxu0 0.0
        %416 = vmatprep.subr.mxu0 0.0
        %417 = vmatpush1.msra.mxu0 0.0
        %418 = vmatprep.subr.mxu0 0.0
        %419 = vmatpush1.msra.mxu0 0.0
        %420 = vmatprep.subr.mxu0 0.0
        %421 = vmatpush1.msra.mxu0 0.0
        %422 = vmatprep.subr.mxu0 0.0
        %423 = vmatpush1.msra.mxu0 0.0
        %424 = vmatprep.subr.mxu0 0.0
        %425 = vmatpush1.msra.mxu0 0.0
        %426 = vmatprep.subr.mxu0 0.0
        %427 = vmatpush1.msra.mxu0 0.0
        %428 = vmatprep.subr.mxu0 0.0
        %429 = vmatpush1.msra.mxu0 0.0
        %430 = vmatprep.subr.mxu0 0.0
        %431 = vmatpush1.msra.mxu0 0.0
        %432 = vmatprep.subr.mxu0 0.0
        %433 = vmatpush1.msra.mxu0 0.0
        %434 = vmatprep.subr.mxu0 0.0
        %435 = vmatpush1.msra.mxu0 0.0
        %436 = vmatprep.subr.mxu0 0.0
        %437 = vmatpush1.msra.mxu0 0.0
        %438 = vmatprep.subr.mxu0 0.0
        %439 = vmatpush1.msra.mxu0 0.0
        %440 = vmatprep.subr.mxu0 0.0
        %441 = vmatpush1.msra.mxu0 0.0
        %442 = vmatprep.mubr.f32.mxu0 0.0
        %443 = vmatmul.mubr.f32.gmra.mrb[0].mxu0 %v291
        %v444 = vpop.f32.mrb[0].mxu0
        %v445 = vadd.f32 %v376, %v444
        %v446 = vpop.f32.mrb[0].mxu0
        %447 = vdwg.mxu0
        %v448 = vmul.f32 %v445, 0.5
        %v449 = vmul.f32 %v445, 0.70710677
        %v450 = verf.f32.pop %v449
        %v451 = vadd.f32 %v450, 1.0
        %v452 = vmul.f32 %v448, %v451
        %v453 = vmul.f32 %v360, %v452
        %454 = vst [vmem:[%s271] sm:$0xff] %v453
        %s455 = sand.u32 %s141, 1
        %s456 = scalar_lea.sflag [#allocation4], %s455
        %s457 = sand.u32 %s141, 1
        %s458 = smul.addr %s457, 8
        %s459 = scalar_lea.vmem [#allocation8], %s458
        // Predicated region
        $region53: #{tpu_custom_call.1} parent=39 // pred_check
          %p460 = pneg %p151
        $region54: #{tpu_custom_call.1} parent=39 // pred_check_branch
          %462 = sbr.rel (%p460) target = $region56
        $region55: #{tpu_custom_call.1} parent=39 // pred_region
          %s464 = ssub.s32 128, 128
          %465 = vsyncadd %s456, %s464
          %s466 = smul.addr %s23, 128
          %s467 = scalar_lea.hbm %s5, %s466
          %s469 = sshll.u32 %s459, 4
          %s470 = int_to_ptr.vmem [resolvable:$true] %s469
          %472 = dma.vmem_to_hbm [thread:$0]  %s470, 128, %s467, %s456
        $region56: #{tpu_custom_call.1} parent=39 // pred_fallthru
          _
      $region40: #{tpu_custom_call.1} parent=5 // pred_fallthru
        _
      %p473 = scmp.le.s32.totalorder 2, %s18
      // Predicated region
      $region57: #{tpu_custom_call.1} parent=5 // pred_check
        %p474 = pneg %p473
      $region58: #{tpu_custom_call.1} parent=5 // pred_check_branch
        %476 = sbr.rel (%p474) target = $region60
      $region59: #{tpu_custom_call.1} parent=5 // pred_region
        %s477 = ssub.s32 %s18, 2
        // Predicated region
        $region61: #{tpu_custom_call.1} parent=59 // pred_check
          %p478 = pneg %p157
        $region62: #{tpu_custom_call.1} parent=59 // pred_check_branch
          %480 = sbr.rel (%p478) target = $region64
        $region63: #{tpu_custom_call.1} parent=59 // pred_region
          %s481 = sand.u32 %s142, 1
          %s482 = scalar_lea.sflag [#allocation4], %s481
          %s483 = sand.u32 %s142, 1
          %s484 = smul.addr %s483, 8
          %s485 = scalar_lea.vmem [#allocation8], %s484
          %486 = dma.done %s482, 128
        $region64: #{tpu_custom_call.1} parent=59 // pred_fallthru
          _
      $region60: #{tpu_custom_call.1} parent=5 // pred_fallthru
        _
    $region6: #{tpu_custom_call.1} parent=1 // loop_footer
      %s22 = sadd.s32 1, %s18
    $region7: #{tpu_custom_call.1} parent=1 // loop_footer_branch
      %17 = sbr.rel target = $region3
    $region8: #{tpu_custom_call.1} parent=1 // loop_exit
      _
    %487 = vsyncpa [#allocation3], 1
    %s488 = scalar_lea.sflag [#allocation3], 1
    %489 = vsyncpa %s488, 1
    %490 = vsyncpa [#allocation6], 1
    %491 = vsyncpa [#allocation4], 1
    %s492 = scalar_lea.sflag [#allocation4], 1
    %493 = vsyncpa %s492, 1

</llo_original>
